<compile_context>
chip_gen: v7x
topology: tpu7x:2x2x1
jax: 0.10.0
libtpu: 0.0.40
codegen_flags: <defaults>
</compile_context>

<pallas_src>
import jax
import jax.numpy as jnp
from jax.experimental import pallas as pl
from jax.experimental.pallas import tpu as pltpu

LANE = 128  # lane width: hidden dim is padded to a multiple of this


def _tensorcores_per_chip():
    """Best-effort TensorCore count per chip: 2 on v7x, 1 on v5e/v6e."""
    try:
        kind = jax.devices()[0].device_kind.lower()
    except Exception:  # pragma: no cover - defensive default
        return 1
    return 2 if ("v7" in kind or "tpu7" in kind) else 1


# ---------------------------------------------------------------------------
# Pallas kernel: masked tanh-RNN recurrence, T_BLK timesteps per grid step.
# ---------------------------------------------------------------------------
def rnn_scan_kernel(xw_ref, len_ref, whh_ref, hn_ref):
    """One grid step = one (batch_block, time_block) tile of the recurrence.

    xw_ref : (T_BLK, B_BLK, H) bf16  precomputed x_t @ W_ih + b (hoisted, time-major)
    len_ref: (B_BLK, 1)        i32   per-row sequence lengths (resident)
    whh_ref: (H, H)            bf16  recurrent weights (resident)
    hn_ref : (B_BLK, H)        f32   resident hidden-state accumulator / output
    """
    tb = pl.program_id(1)               # time-block index (serial, "arbitrary")
    t_blk = xw_ref.shape[0]

    @pl.when(tb == 0)
    def _init():
        hn_ref[...] = jnp.zeros_like(hn_ref)

    whh = whh_ref[...]                  # (H, H) bf16, loaded once per grid step
    # Hoisted mask math: remaining valid steps for each row in this time block.
    rem = len_ref[...] - tb * t_blk     # (B_BLK, 1) i32

    def step(i, h):
        h_new = jnp.tanh(
            xw_ref[i].astype(jnp.float32)               # (B_BLK, H)
            + jnp.dot(h.astype(jnp.bfloat16), whh,
                      preferred_element_type=jnp.float32)
        )
        # carry h unchanged once past this row's valid length
        return jnp.where(i < rem, h_new, h)

    hn_ref[...] = jax.lax.fori_loop(0, t_blk, step, hn_ref[...], unroll=True)


def rnn_last_hidden(xw_bf16, lengths, w_hh_bf16, *, t_blk=32):
    """xw_bf16: (T, N, H) bf16 time-major (input projection applied),
    lengths: (N,) i32, w_hh_bf16: (H, H) bf16.
    Returns hn: (N, H) f32 = hidden state at the last valid step of each row."""
    T, N, H = xw_bf16.shape

    # Clamp the time block to the (8-rounded) sequence length, then pad time to
    # a multiple of t_blk (extra steps are masked -> no-ops).
    t_blk = min(t_blk, ((T + 7) // 8) * 8)
    t_pad = (-T) % t_blk
    if t_pad:
        xw_bf16 = jnp.pad(xw_bf16, ((0, t_pad), (0, 0), (0, 0)))
    # Pad batch rows to a multiple of 8 sublanes (padded rows get length 0).
    b_pad = (-N) % 8
    if b_pad:
        xw_bf16 = jnp.pad(xw_bf16, ((0, 0), (0, b_pad), (0, 0)))
        lengths = jnp.pad(lengths, (0, b_pad))
    Tp, Np = T + t_pad, N + b_pad

    # Chip-dependent batch blocking: split only where a second TensorCore exists.
    n_tc = _tensorcores_per_chip()
    if n_tc >= 2 and Np % 16 == 0:
        b_blk = Np // 2
        dim_sem = (pltpu.CORE_PARALLEL, pltpu.ARBITRARY)
    else:
        b_blk = Np                      # single block: no serial batch overhead
        dim_sem = (pltpu.ARBITRARY, pltpu.ARBITRARY)
    nb, nt = Np // b_blk, Tp // t_blk

    lens_2d = lengths.astype(jnp.int32).reshape(Np, 1)

    hn = pl.pallas_call(
        rnn_scan_kernel,
        out_shape=jax.ShapeDtypeStruct((Np, H), jnp.float32),
        grid=(nb, nt),
        in_specs=[
            pl.BlockSpec((t_blk, b_blk, H), lambda bb, tb: (tb, bb, 0)),  # xw (bf16)
            pl.BlockSpec((b_blk, 1), lambda bb, tb: (bb, 0)),   # lengths, resident
            pl.BlockSpec((H, H), lambda bb, tb: (0, 0)),        # W_hh, loaded once
        ],
        out_specs=pl.BlockSpec((b_blk, H), lambda bb, tb: (bb, 0)),
        compiler_params=pltpu.CompilerParams(
            dimension_semantics=dim_sem,
        ),
    )(xw_bf16, lens_2d, w_hh_bf16)
    return hn[:N]


# ---------------------------------------------------------------------------
# Model wrapper (glue: embedding gather, hoisted projection, classifier)
# ---------------------------------------------------------------------------
def init_params(key, vocab, E, H, C):
    k = jax.random.split(key, 6)
    s = 0.1
    return {
        "embed": s * jax.random.normal(k[0], (vocab, E), jnp.float32),
        "w_ih": s * jax.random.normal(k[1], (E, H), jnp.float32),
        "w_hh": s * jax.random.normal(k[2], (H, H), jnp.float32),
        "b": s * jax.random.normal(k[3], (1, H), jnp.float32),
        "w_c": s * jax.random.normal(k[4], (2 * H, C), jnp.float32),
        "b_c": s * jax.random.normal(k[5], (1, C), jnp.float32),
    }


def _pad_to(x, axis, mult):
    pad = (-x.shape[axis]) % mult
    if pad == 0:
        return x
    widths = [(0, 0)] * x.ndim
    widths[axis] = (0, pad)
    return jnp.pad(x, widths)


@jax.jit
def rnn_model(params, X1, X2, len1, len2):
    B, T = X1.shape
    H = params["w_hh"].shape[0]

    # --- Siamese batching: one recurrent pass over the stacked pair ----------
    tokens = jnp.concatenate([X1, X2], axis=0)            # (2B, T)
    lengths = jnp.concatenate([len1, len2], axis=0)       # (2B,)

    # --- Embedding lookup, directly TIME-MAJOR (transpose the tiny int tokens,
    #     not the big float activations) --------------------------------------
    emb_tm = jnp.take(params["embed"], jnp.transpose(tokens), axis=0)  # (T, 2B, E)

    # --- Lane-pad hidden dim; keep padded rows/cols of the weights zero ------
    w_ih = _pad_to(params["w_ih"], 1, LANE)               # (E, Hp)
    b = _pad_to(params["b"], 1, LANE)                     # (1, Hp)
    w_hh = _pad_to(_pad_to(params["w_hh"], 0, LANE), 1, LANE)   # (Hp, Hp)

    # --- Hoisted input projection: one big bf16 MXU matmul (f32 accumulate),
    #     stored bf16 to halve the kernel's input DMA --------------------------
    xw = (jnp.dot(emb_tm.astype(jnp.bfloat16), w_ih.astype(jnp.bfloat16),
                  preferred_element_type=jnp.float32)
          + b).astype(jnp.bfloat16)                       # (T, 2B, Hp) bf16

    # --- Serial recurrence (Pallas) -------------------------------------------
    hn = rnn_last_hidden(xw, lengths.astype(jnp.int32),
                         w_hh.astype(jnp.bfloat16))       # (2B, Hp) f32
    hn = hn[:, :H]                                        # drop all-zero padded lanes
    hn1, hn2 = hn[:B], hn[B:]

    # --- Classifier: tiny (B,2H)x(2H,C) matmul -> XLA (per perf review) ------
    logits = hn1 @ params["w_c"][:H] + hn2 @ params["w_c"][H:] + params["b_c"]
    return logits


# ---------------------------------------------------------------------------
# Pure-JAX reference (same math: hoisted projection, bf16 xw storage, bf16
# matmul inputs with f32 accumulation, f32 hidden carry)
# ---------------------------------------------------------------------------
def rnn_model_ref(params, X1, X2, len1, len2):
    H = params["w_hh"].shape[0]
    whh_bf = params["w_hh"].astype(jnp.bfloat16)
    w_ih_bf = params["w_ih"].astype(jnp.bfloat16)

    def enc(tokens, lens):
        emb = jnp.take(params["embed"], tokens, axis=0)               # (B, T, E)
        xw = (jnp.dot(emb.astype(jnp.bfloat16), w_ih_bf,
                      preferred_element_type=jnp.float32)
              + params["b"]).astype(jnp.bfloat16)                     # (B, T, H) bf16
        h = jnp.zeros((tokens.shape[0], H), jnp.float32)
        for t in range(tokens.shape[1]):
            h_new = jnp.tanh(xw[:, t].astype(jnp.float32)
                             + jnp.dot(h.astype(jnp.bfloat16), whh_bf,
                                       preferred_element_type=jnp.float32))
            h = jnp.where((t < lens)[:, None], h_new, h)
        return h

    hn1 = enc(X1, len1)
    hn2 = enc(X2, len2)
    feats = jnp.concatenate([hn1, hn2], axis=-1)
    return feats @ params["w_c"] + params["b_c"]


if __name__ == "__main__":
    B, T, E, H, C, VOCAB = 8, 8, 32, 32, 4, 50

    key = jax.random.PRNGKey(0)
    kp, k1, k2, k3, k4 = jax.random.split(key, 5)
    params = init_params(kp, VOCAB, E, H, C)

    X1 = jax.random.randint(k1, (B, T), 0, VOCAB, jnp.int32)
    X2 = jax.random.randint(k2, (B, T), 0, VOCAB, jnp.int32)
    len1 = jax.random.randint(k3, (B,), 1, T + 1, jnp.int32)
    len2 = jax.random.randint(k4, (B,), 1, T + 1, jnp.int32)

    out = rnn_model(params, X1, X2, len1, len2)
    out = jax.block_until_ready(out)

    ref = rnn_model_ref(params, X1, X2, len1, len2)
    assert out.shape == (B, C)
    assert jnp.allclose(out, ref, atol=2e-3, rtol=2e-3), "mismatch vs reference"

    print("KERNEL_OK")
</pallas_src>

<mosaic_0001>
module attributes {stable_mosaic.version = 11 : i64} {
  func.func @rnn_scan_kernel(%arg0: i32, %arg1: i32, %arg2: memref<8x16x128xbf16, #tpu.memory_space<vmem>>, %arg3: memref<16x1xi32, #tpu.memory_space<vmem>>, %arg4: memref<128x128xbf16, #tpu.memory_space<vmem>>, %arg5: memref<16x128xf32, #tpu.memory_space<vmem>>) attributes {dimension_semantics = [#tpu.dimension_semantics<arbitrary>, #tpu.dimension_semantics<arbitrary>], iteration_bounds = array<i64: 1, 1>, scalar_prefetch = 0 : i64, scratch_operands = 0 : i64, tpu.core_type = #tpu.core_type<tc>, window_params = [{transform_indices = @transform_0, window_bounds = array<i64: 8, 16, 128>}, {transform_indices = @transform_1, window_bounds = array<i64: 16, 1>}, {pipeline_mode = #tpu.pipeline_mode<synchronous>, transform_indices = @transform_2, window_bounds = array<i64: 128, 128>}, {transform_indices = @transform_3, window_bounds = array<i64: 16, 128>}]} {
    %c0_i32 = arith.constant 0 : i32
    %0 = arith.cmpi eq, %arg1, %c0_i32 : i32
    %1 = arith.extui %0 : i1 to i32
    %c0_i32_0 = arith.constant 0 : i32
    %2 = arith.cmpi ne, %1, %c0_i32_0 : i32
    scf.if %2 {
      %cst_33 = arith.constant 0.000000e+00 : f32
      %114 = vector.broadcast %cst_33 : f32 to vector<16x128xf32>
      %c0_34 = arith.constant 0 : index
      %c0_35 = arith.constant 0 : index
      %115 = vector.load %arg5[%c0_34, %c0_35] : memref<16x128xf32, #tpu.memory_space<vmem>>, vector<16x128xf32>
      tpu.vector_store %arg5[%c0_34, %c0_35], %114 {strides = array<i32>} : memref<16x128xf32, #tpu.memory_space<vmem>>, vector<16x128xf32>,
    } else {
    }
    %c0 = arith.constant 0 : index
    %c0_1 = arith.constant 0 : index
    %3 = vector.load %arg4[%c0, %c0_1] : memref<128x128xbf16, #tpu.memory_space<vmem>>, vector<128x128xbf16>
    %c0_2 = arith.constant 0 : index
    %c0_3 = arith.constant 0 : index
    %4 = vector.load %arg3[%c0_2, %c0_3] : memref<16x1xi32, #tpu.memory_space<vmem>>, vector<16x1xi32>
    %c8_i32 = arith.constant 8 : i32
    %5 = arith.muli %arg1, %c8_i32 : i32
    %6 = vector.broadcast %5 : i32 to vector<16x1xi32>
    %7 = arith.subi %4, %6 : vector<16x1xi32>
    %c0_4 = arith.constant 0 : index
    %c0_5 = arith.constant 0 : index
    %8 = vector.load %arg5[%c0_4, %c0_5] : memref<16x128xf32, #tpu.memory_space<vmem>>, vector<16x128xf32>
    %c0_i32_6 = arith.constant 0 : i32
    %9 = arith.index_cast %c0_i32_6 : i32 to index
    %c0_7 = arith.constant 0 : index
    %c0_8 = arith.constant 0 : index
    %10 = vector.load %arg2[%9, %c0_7, %c0_8] : memref<8x16x128xbf16, #tpu.memory_space<vmem>>, vector<1x16x128xbf16>
    %11 = vector.shape_cast %10 : vector<1x16x128xbf16> to vector<16x128xbf16>
    %12 = arith.extf %11 : vector<16x128xbf16> to vector<16x128xf32>
    %13 = arith.truncf %8 : vector<16x128xf32> to vector<16x128xbf16>
    %cst = arith.constant dense<0.000000e+00> : vector<16x128xf32>
    %14 = tpu.matmul %13, %3, %cst {dimension_numbers = #tpu.dot_dimension_numbers<[1], [0], [0], [1], [0, 0, 1, 1], [], []>} : vector<16x128xbf16>, vector<128x128xbf16>, vector<16x128xf32> -> vector<16x128xf32>
    %15 = arith.addf %12, %14 : vector<16x128xf32>
    %16 = math.tanh %15 : vector<16x128xf32>
    %17 = vector.broadcast %c0_i32_6 : i32 to vector<16x1xi32>
    %18 = arith.cmpi slt, %17, %7 : vector<16x1xi32>
    %19 = vector.shape_cast %18 : vector<16x1xi1> to vector<16x1xi1>
    %20 = vector.broadcast %19 : vector<16x1xi1> to vector<16x128xi1>
    %21 = arith.select %20, %16, %8 : vector<16x128xi1>, vector<16x128xf32>
    %c1_i32 = arith.constant 1 : i32
    %22 = arith.index_cast %c1_i32 : i32 to index
    %c0_9 = arith.constant 0 : index
    %c0_10 = arith.constant 0 : index
    %23 = vector.load %arg2[%22, %c0_9, %c0_10] : memref<8x16x128xbf16, #tpu.memory_space<vmem>>, vector<1x16x128xbf16>
    %24 = vector.shape_cast %23 : vector<1x16x128xbf16> to vector<16x128xbf16>
    %25 = arith.extf %24 : vector<16x128xbf16> to vector<16x128xf32>
    %26 = arith.truncf %21 : vector<16x128xf32> to vector<16x128xbf16>
    %cst_11 = arith.constant dense<0.000000e+00> : vector<16x128xf32>
    %27 = tpu.matmul %26, %3, %cst_11 {dimension_numbers = #tpu.dot_dimension_numbers<[1], [0], [0], [1], [0, 0, 1, 1], [], []>} : vector<16x128xbf16>, vector<128x128xbf16>, vector<16x128xf32> -> vector<16x128xf32>
    %28 = arith.addf %25, %27 : vector<16x128xf32>
    %29 = math.tanh %28 : vector<16x128xf32>
    %30 = vector.broadcast %c1_i32 : i32 to vector<16x1xi32>
    %31 = arith.cmpi slt, %30, %7 : vector<16x1xi32>
    %32 = vector.shape_cast %31 : vector<16x1xi1> to vector<16x1xi1>
    %33 = vector.broadcast %32 : vector<16x1xi1> to vector<16x128xi1>
    %34 = arith.select %33, %29, %21 : vector<16x128xi1>, vector<16x128xf32>
    %c2_i32 = arith.constant 2 : i32
    %35 = arith.index_cast %c2_i32 : i32 to index
    %c0_12 = arith.constant 0 : index
    %c0_13 = arith.constant 0 : index
    %36 = vector.load %arg2[%35, %c0_12, %c0_13] : memref<8x16x128xbf16, #tpu.memory_space<vmem>>, vector<1x16x128xbf16>
    %37 = vector.shape_cast %36 : vector<1x16x128xbf16> to vector<16x128xbf16>
    %38 = arith.extf %37 : vector<16x128xbf16> to vector<16x128xf32>
    %39 = arith.truncf %34 : vector<16x128xf32> to vector<16x128xbf16>
    %cst_14 = arith.constant dense<0.000000e+00> : vector<16x128xf32>
    %40 = tpu.matmul %39, %3, %cst_14 {dimension_numbers = #tpu.dot_dimension_numbers<[1], [0], [0], [1], [0, 0, 1, 1], [], []>} : vector<16x128xbf16>, vector<128x128xbf16>, vector<16x128xf32> -> vector<16x128xf32>
    %41 = arith.addf %38, %40 : vector<16x128xf32>
    %42 = math.tanh %41 : vector<16x128xf32>
    %43 = vector.broadcast %c2_i32 : i32 to vector<16x1xi32>
    %44 = arith.cmpi slt, %43, %7 : vector<16x1xi32>
    %45 = vector.shape_cast %44 : vector<16x1xi1> to vector<16x1xi1>
    %46 = vector.broadcast %45 : vector<16x1xi1> to vector<16x128xi1>
    %47 = arith.select %46, %42, %34 : vector<16x128xi1>, vector<16x128xf32>
    %c3_i32 = arith.constant 3 : i32
    %48 = arith.index_cast %c3_i32 : i32 to index
    %c0_15 = arith.constant 0 : index
    %c0_16 = arith.constant 0 : index
    %49 = vector.load %arg2[%48, %c0_15, %c0_16] : memref<8x16x128xbf16, #tpu.memory_space<vmem>>, vector<1x16x128xbf16>
    %50 = vector.shape_cast %49 : vector<1x16x128xbf16> to vector<16x128xbf16>
    %51 = arith.extf %50 : vector<16x128xbf16> to vector<16x128xf32>
    %52 = arith.truncf %47 : vector<16x128xf32> to vector<16x128xbf16>
    %cst_17 = arith.constant dense<0.000000e+00> : vector<16x128xf32>
    %53 = tpu.matmul %52, %3, %cst_17 {dimension_numbers = #tpu.dot_dimension_numbers<[1], [0], [0], [1], [0, 0, 1, 1], [], []>} : vector<16x128xbf16>, vector<128x128xbf16>, vector<16x128xf32> -> vector<16x128xf32>
    %54 = arith.addf %51, %53 : vector<16x128xf32>
    %55 = math.tanh %54 : vector<16x128xf32>
    %56 = vector.broadcast %c3_i32 : i32 to vector<16x1xi32>
    %57 = arith.cmpi slt, %56, %7 : vector<16x1xi32>
    %58 = vector.shape_cast %57 : vector<16x1xi1> to vector<16x1xi1>
    %59 = vector.broadcast %58 : vector<16x1xi1> to vector<16x128xi1>
    %60 = arith.select %59, %55, %47 : vector<16x128xi1>, vector<16x128xf32>
    %c4_i32 = arith.constant 4 : i32
    %61 = arith.index_cast %c4_i32 : i32 to index
    %c0_18 = arith.constant 0 : index
    %c0_19 = arith.constant 0 : index
    %62 = vector.load %arg2[%61, %c0_18, %c0_19] : memref<8x16x128xbf16, #tpu.memory_space<vmem>>, vector<1x16x128xbf16>
    %63 = vector.shape_cast %62 : vector<1x16x128xbf16> to vector<16x128xbf16>
    %64 = arith.extf %63 : vector<16x128xbf16> to vector<16x128xf32>
    %65 = arith.truncf %60 : vector<16x128xf32> to vector<16x128xbf16>
    %cst_20 = arith.constant dense<0.000000e+00> : vector<16x128xf32>
    %66 = tpu.matmul %65, %3, %cst_20 {dimension_numbers = #tpu.dot_dimension_numbers<[1], [0], [0], [1], [0, 0, 1, 1], [], []>} : vector<16x128xbf16>, vector<128x128xbf16>, vector<16x128xf32> -> vector<16x128xf32>
    %67 = arith.addf %64, %66 : vector<16x128xf32>
    %68 = math.tanh %67 : vector<16x128xf32>
    %69 = vector.broadcast %c4_i32 : i32 to vector<16x1xi32>
    %70 = arith.cmpi slt, %69, %7 : vector<16x1xi32>
    %71 = vector.shape_cast %70 : vector<16x1xi1> to vector<16x1xi1>
    %72 = vector.broadcast %71 : vector<16x1xi1> to vector<16x128xi1>
    %73 = arith.select %72, %68, %60 : vector<16x128xi1>, vector<16x128xf32>
    %c5_i32 = arith.constant 5 : i32
    %74 = arith.index_cast %c5_i32 : i32 to index
    %c0_21 = arith.constant 0 : index
    %c0_22 = arith.constant 0 : index
    %75 = vector.load %arg2[%74, %c0_21, %c0_22] : memref<8x16x128xbf16, #tpu.memory_space<vmem>>, vector<1x16x128xbf16>
    %76 = vector.shape_cast %75 : vector<1x16x128xbf16> to vector<16x128xbf16>
    %77 = arith.extf %76 : vector<16x128xbf16> to vector<16x128xf32>
    %78 = arith.truncf %73 : vector<16x128xf32> to vector<16x128xbf16>
    %cst_23 = arith.constant dense<0.000000e+00> : vector<16x128xf32>
    %79 = tpu.matmul %78, %3, %cst_23 {dimension_numbers = #tpu.dot_dimension_numbers<[1], [0], [0], [1], [0, 0, 1, 1], [], []>} : vector<16x128xbf16>, vector<128x128xbf16>, vector<16x128xf32> -> vector<16x128xf32>
    %80 = arith.addf %77, %79 : vector<16x128xf32>
    %81 = math.tanh %80 : vector<16x128xf32>
    %82 = vector.broadcast %c5_i32 : i32 to vector<16x1xi32>
    %83 = arith.cmpi slt, %82, %7 : vector<16x1xi32>
    %84 = vector.shape_cast %83 : vector<16x1xi1> to vector<16x1xi1>
    %85 = vector.broadcast %84 : vector<16x1xi1> to vector<16x128xi1>
    %86 = arith.select %85, %81, %73 : vector<16x128xi1>, vector<16x128xf32>
    %c6_i32 = arith.constant 6 : i32
    %87 = arith.index_cast %c6_i32 : i32 to index
    %c0_24 = arith.constant 0 : index
    %c0_25 = arith.constant 0 : index
    %88 = vector.load %arg2[%87, %c0_24, %c0_25] : memref<8x16x128xbf16, #tpu.memory_space<vmem>>, vector<1x16x128xbf16>
    %89 = vector.shape_cast %88 : vector<1x16x128xbf16> to vector<16x128xbf16>
    %90 = arith.extf %89 : vector<16x128xbf16> to vector<16x128xf32>
    %91 = arith.truncf %86 : vector<16x128xf32> to vector<16x128xbf16>
    %cst_26 = arith.constant dense<0.000000e+00> : vector<16x128xf32>
    %92 = tpu.matmul %91, %3, %cst_26 {dimension_numbers = #tpu.dot_dimension_numbers<[1], [0], [0], [1], [0, 0, 1, 1], [], []>} : vector<16x128xbf16>, vector<128x128xbf16>, vector<16x128xf32> -> vector<16x128xf32>
    %93 = arith.addf %90, %92 : vector<16x128xf32>
    %94 = math.tanh %93 : vector<16x128xf32>
    %95 = vector.broadcast %c6_i32 : i32 to vector<16x1xi32>
    %96 = arith.cmpi slt, %95, %7 : vector<16x1xi32>
    %97 = vector.shape_cast %96 : vector<16x1xi1> to vector<16x1xi1>
    %98 = vector.broadcast %97 : vector<16x1xi1> to vector<16x128xi1>
    %99 = arith.select %98, %94, %86 : vector<16x128xi1>, vector<16x128xf32>
    %c7_i32 = arith.constant 7 : i32
    %100 = arith.index_cast %c7_i32 : i32 to index
    %c0_27 = arith.constant 0 : index
    %c0_28 = arith.constant 0 : index
    %101 = vector.load %arg2[%100, %c0_27, %c0_28] : memref<8x16x128xbf16, #tpu.memory_space<vmem>>, vector<1x16x128xbf16>
    %102 = vector.shape_cast %101 : vector<1x16x128xbf16> to vector<16x128xbf16>
    %103 = arith.extf %102 : vector<16x128xbf16> to vector<16x128xf32>
    %104 = arith.truncf %99 : vector<16x128xf32> to vector<16x128xbf16>
    %cst_29 = arith.constant dense<0.000000e+00> : vector<16x128xf32>
    %105 = tpu.matmul %104, %3, %cst_29 {dimension_numbers = #tpu.dot_dimension_numbers<[1], [0], [0], [1], [0, 0, 1, 1], [], []>} : vector<16x128xbf16>, vector<128x128xbf16>, vector<16x128xf32> -> vector<16x128xf32>
    %106 = arith.addf %103, %105 : vector<16x128xf32>
    %107 = math.tanh %106 : vector<16x128xf32>
    %108 = vector.broadcast %c7_i32 : i32 to vector<16x1xi32>
    %109 = arith.cmpi slt, %108, %7 : vector<16x1xi32>
    %110 = vector.shape_cast %109 : vector<16x1xi1> to vector<16x1xi1>
    %111 = vector.broadcast %110 : vector<16x1xi1> to vector<16x128xi1>
    %112 = arith.select %111, %107, %99 : vector<16x128xi1>, vector<16x128xf32>
    %c8_i32_30 = arith.constant 8 : i32
    %c0_31 = arith.constant 0 : index
    %c0_32 = arith.constant 0 : index
    %113 = vector.load %arg5[%c0_31, %c0_32] : memref<16x128xf32, #tpu.memory_space<vmem>>, vector<16x128xf32>
    tpu.vector_store %arg5[%c0_31, %c0_32], %112 {strides = array<i32>} : memref<16x128xf32, #tpu.memory_space<vmem>>, vector<16x128xf32>,
    return
  }
  func.func @transform_0(%arg0: i32, %arg1: i32) -> (i32, i32, i32) {
    %c0_i32 = arith.constant 0 : i32
    %c0_i32_0 = arith.constant 0 : i32
    return %arg1, %arg0, %c0_i32 : i32, i32, i32
  }
  func.func @transform_1(%arg0: i32, %arg1: i32) -> (i32, i32) {
    %c0_i32 = arith.constant 0 : i32
    %c0_i32_0 = arith.constant 0 : i32
    return %arg0, %c0_i32 : i32, i32
  }
  func.func @transform_2(%arg0: i32, %arg1: i32) -> (i32, i32) {
    %c0_i32 = arith.constant 0 : i32
    %c0_i32_0 = arith.constant 0 : i32
    %c0_i32_1 = arith.constant 0 : i32
    return %c0_i32, %c0_i32_0 : i32, i32
  }
  func.func @transform_3(%arg0: i32, %arg1: i32) -> (i32, i32) {
    %c0_i32 = arith.constant 0 : i32
    %c0_i32_0 = arith.constant 0 : i32
    return %arg0, %c0_i32 : i32, i32
  }
}

</mosaic_0001>

<llo_original>
// kernel: rnn_model.1
$region0: #{rnn_model.1}
  #allocation0 [shape = 'u32[]', space=smem, size = 0x4, offset = 0x4, fixed_abs, tag = 'smem constant byte address 0x4 - core index']
  #allocation1 [shape = 'u32[144,128]{1,0:T(1,128)}', space=vmem, size = 0x12000, scoped, tag = 'internal scratch']
  %s0 = inlined_call_operand.vmem [shape: bf16[8,16,128], index: 0, kind: input, shape index: {}]
  %s1 = inlined_call_operand.vmem [shape: s32[16,1], index: 1, kind: input, shape index: {}]
  %s2 = inlined_call_operand.vmem [shape: bf16[128,128], index: 2, kind: input, shape index: {}]
  %s3 = inlined_call_operand.vmem [shape: f32[16,128], index: 3, kind: output, shape index: {}]
  %s4 = sld [smem:[#allocation0]]
  $region26: #{rnn_model.1} parent=0
    _
  %s6 = ssub.s32 1, %s4
  %s7 = scalar_select 0, %s6, %s4
  // Predicated region
  $region2: #{rnn_model.1} parent=0 // pred_check
    _
  $region3: #{rnn_model.1} parent=0 // pred_check_branch
    %9 = sbr.rel (0) target = $region5
  $region4: #{rnn_model.1} parent=0 // pred_region
    _
  $region5: #{rnn_model.1} parent=0 // pred_fallthru
    _
  // Predicated region
  $region6: #{rnn_model.1} parent=0 // pred_check
    _
  $region7: #{rnn_model.1} parent=0 // pred_check_branch
    %11 = sbr.rel (0) target = $region9
  $region8: #{rnn_model.1} parent=0 // pred_region
    _
  $region9: #{rnn_model.1} parent=0 // pred_fallthru
    _
  // Predicated region
  $region10: #{rnn_model.1} parent=0 // pred_check
    _
  $region11: #{rnn_model.1} parent=0 // pred_check_branch
    %13 = sbr.rel (0) target = $region13
  $region12: #{rnn_model.1} parent=0 // pred_region
    _
  $region13: #{rnn_model.1} parent=0 // pred_fallthru
    _
  %p15 = scmp.eq.s32.totalorder 0, 0
  // Predicated region
  $region14: #{rnn_model.1} parent=0 // pred_check
    %p16 = pneg %p15
  $region15: #{rnn_model.1} parent=0 // pred_check_branch
    %18 = sbr.rel (%p16) target = $region17
  $region16: #{rnn_model.1} parent=0 // pred_region
    %19 = vst [vmem:[%s3] sm:$0xff] 0.0
    %20 = vst [vmem:[%s3 + $0x8] sm:$0xff] 0.0
  $region17: #{rnn_model.1} parent=0 // pred_fallthru
    _
  %v21 = vld [vmem:[%s2] sm:$0xf]
  %v22 = vld [vmem:[%s2 + $0x4] sm:$0xf]
  %v23 = vld [vmem:[%s2 + $0x8] sm:$0xf]
  %v24 = vld [vmem:[%s2 + $0xc] sm:$0xf]
  %v25 = vld [vmem:[%s2 + $0x10] sm:$0xf]
  %v26 = vld [vmem:[%s2 + $0x14] sm:$0xf]
  %v27 = vld [vmem:[%s2 + $0x18] sm:$0xf]
  %v28 = vld [vmem:[%s2 + $0x1c] sm:$0xf]
  %v29 = vld [vmem:[%s2 + $0x20] sm:$0xf]
  %v30 = vld [vmem:[%s2 + $0x24] sm:$0xf]
  %v31 = vld [vmem:[%s2 + $0x28] sm:$0xf]
  %v32 = vld [vmem:[%s2 + $0x2c] sm:$0xf]
  %v33 = vld [vmem:[%s2 + $0x30] sm:$0xf]
  %v34 = vld [vmem:[%s2 + $0x34] sm:$0xf]
  %v35 = vld [vmem:[%s2 + $0x38] sm:$0xf]
  %v36 = vld [vmem:[%s2 + $0x3c] sm:$0xf]
  %v37 = vld [vmem:[%s1] sm:$0xff]
  %v38 = vld [vmem:[%s1 + $0x8] sm:$0xff]
  %s39 = smul.u32 0, 8
  %v40 = vstv %s39
  %v41 = vsub.s32 %v37, %v40
  %v42 = vsub.s32 %v38, %v40
  %v43 = vld [vmem:[%s3] sm:$0xff]
  %v44 = vld [vmem:[%s3 + $0x8] sm:$0xff]
  %v45 = vld [vmem:[%s0] sm:$0xf]
  %v46 = vld [vmem:[%s0 + $0x4] sm:$0xf]
  %v47 = vunpack.c.l.bf16 %v45
  %v48 = vunpack.c.l.bf16 %v46
  %v49 = vpack.c.bf16 %v44, %v43
  %v66 = vunpack.c.l.b16 %v21
  %v67 = vunpack.c.l.b16 %v22
  %v68 = vunpack.c.l.b16 %v23
  %v69 = vunpack.c.l.b16 %v24
  %v70 = vunpack.c.l.b16 %v25
  %v71 = vunpack.c.l.b16 %v26
  %v72 = vunpack.c.l.b16 %v27
  %v73 = vunpack.c.l.b16 %v28
  %v74 = vunpack.c.l.b16 %v29
  %v75 = vunpack.c.l.b16 %v30
  %v76 = vunpack.c.l.b16 %v31
  %v77 = vunpack.c.l.b16 %v32
  %v78 = vunpack.c.l.b16 %v33
  %v79 = vunpack.c.l.b16 %v34
  %v80 = vunpack.c.l.b16 %v35
  %v81 = vunpack.c.l.b16 %v36
  %v82 = vpack.c.b16 %v67, %v66
  %v83 = vpack.c.b16 %v69, %v68
  %v84 = vpack.c.b16 %v71, %v70
  %v85 = vpack.c.b16 %v73, %v72
  %v86 = vpack.c.b16 %v75, %v74
  %v87 = vpack.c.b16 %v77, %v76
  %v88 = vpack.c.b16 %v79, %v78
  %v89 = vpack.c.b16 %v81, %v80
  %98 = vmatprep.subr.bf16.mxu0 0
  %99 = vmatpush1.bf16.msra.mxu0 %v82
  %100 = vmatprep.subr.bf16.mxu0 0
  %101 = vmatpush1.bf16.msra.mxu0 %v83
  %102 = vmatprep.subr.bf16.mxu0 0
  %103 = vmatpush1.bf16.msra.mxu0 %v84
  %104 = vmatprep.subr.bf16.mxu0 0
  %105 = vmatpush1.bf16.msra.mxu0 %v85
  %106 = vmatprep.subr.bf16.mxu0 0
  %107 = vmatpush1.bf16.msra.mxu0 %v86
  %108 = vmatprep.subr.bf16.mxu0 0
  %109 = vmatpush1.bf16.msra.mxu0 %v87
  %110 = vmatprep.subr.bf16.mxu0 0
  %111 = vmatpush1.bf16.msra.mxu0 %v88
  %112 = vmatprep.subr.bf16.mxu0 0
  %113 = vmatpush1.bf16.msra.mxu0 %v89
  %114 = vmatprep.subr.bf16.mxu0 0
  %115 = vmatpush1.bf16.msra.mxu0 0
  %116 = vmatprep.subr.bf16.mxu0 0
  %117 = vmatpush1.bf16.msra.mxu0 0
  %118 = vmatprep.subr.bf16.mxu0 0
  %119 = vmatpush1.bf16.msra.mxu0 0
  %120 = vmatprep.subr.bf16.mxu0 0
  %121 = vmatpush1.bf16.msra.mxu0 0
  %122 = vmatprep.subr.bf16.mxu0 0
  %123 = vmatpush1.bf16.msra.mxu0 0
  %124 = vmatprep.subr.bf16.mxu0 0
  %125 = vmatpush1.bf16.msra.mxu0 0
  %126 = vmatprep.subr.bf16.mxu0 0
  %127 = vmatpush1.bf16.msra.mxu0 0
  %128 = vmatprep.subr.bf16.mxu0 0
  %129 = vmatpush1.bf16.msra.mxu0 0
  %130 = vmatprep.mubr.bf16.mxu0 0
  %131 = vmatmul.mubr.bf16.gmra.mrb[0].mxu0 %v49
  %v132 = vpop.f32.mrb[0].mxu0
  %v133 = vadd.f32 0.0, %v132
  %v134 = vpop.f32.mrb[0].mxu0
  %v135 = vpop.f32.mrb[0].mxu0
  %v136 = vadd.f32 0.0, %v135
  %v137 = vpop.f32.mrb[0].mxu0
  %138 = vdwg.mxu0
  %v139 = vadd.f32 %v47, %v133
  %v140 = vadd.f32 %v48, %v136
  %v141 = vtanh.pop %v139
  %v142 = vtanh.pop %v140
  %vm143 = vcmp.gt.s32.totalorder %v41, 0
  %vm144 = vcmp.gt.s32.totalorder %v42, 0
  %v145 = vsel %vm143, 1, 0
  %v146 = vsel %vm144, 1, 0
  %147 = vset.pattern.permute.xlu0 0
  %148 = vperm.xlu0 %147, %v145
  %v149 = vpop.permute.xlu0 %148
  %150 = vset.pattern.permute.xlu0 0
  %151 = vperm.xlu0 %150, %v146
  %v152 = vpop.permute.xlu0 %151
  %vm153 = vcmp.eq.s32.totalorder %v149, 1
  %vm154 = vcmp.eq.s32.totalorder %v152, 1
  %v155 = vsel %vm153, %v141, %v43
  %v156 = vsel %vm154, %v142, %v44
  %s157 = scalar_lea.vmem %s0, 8
  %v158 = vld [vmem:[%s157] sm:$0xf]
  %v159 = vld [vmem:[%s157 + $0x4] sm:$0xf]
  %v160 = vunpack.c.l.bf16 %v158
  %v161 = vunpack.c.l.bf16 %v159
  %v162 = vpack.c.bf16 %v156, %v155
  %163 = vmatprep.subr.bf16.mxu0 0
  %164 = vmatpush1.bf16.msra.mxu0 %v82
  %165 = vmatprep.subr.bf16.mxu0 0
  %166 = vmatpush1.bf16.msra.mxu0 %v83
  %167 = vmatprep.subr.bf16.mxu0 0
  %168 = vmatpush1.bf16.msra.mxu0 %v84
  %169 = vmatprep.subr.bf16.mxu0 0
  %170 = vmatpush1.bf16.msra.mxu0 %v85
  %171 = vmatprep.subr.bf16.mxu0 0
  %172 = vmatpush1.bf16.msra.mxu0 %v86
  %173 = vmatprep.subr.bf16.mxu0 0
  %174 = vmatpush1.bf16.msra.mxu0 %v87
  %175 = vmatprep.subr.bf16.mxu0 0
  %176 = vmatpush1.bf16.msra.mxu0 %v88
  %177 = vmatprep.subr.bf16.mxu0 0
  %178 = vmatpush1.bf16.msra.mxu0 %v89
  %179 = vmatprep.subr.bf16.mxu0 0
  %180 = vmatpush1.bf16.msra.mxu0 0
  %181 = vmatprep.subr.bf16.mxu0 0
  %182 = vmatpush1.bf16.msra.mxu0 0
  %183 = vmatprep.subr.bf16.mxu0 0
  %184 = vmatpush1.bf16.msra.mxu0 0
  %185 = vmatprep.subr.bf16.mxu0 0
  %186 = vmatpush1.bf16.msra.mxu0 0
  %187 = vmatprep.subr.bf16.mxu0 0
  %188 = vmatpush1.bf16.msra.mxu0 0
  %189 = vmatprep.subr.bf16.mxu0 0
  %190 = vmatpush1.bf16.msra.mxu0 0
  %191 = vmatprep.subr.bf16.mxu0 0
  %192 = vmatpush1.bf16.msra.mxu0 0
  %193 = vmatprep.subr.bf16.mxu0 0
  %194 = vmatpush1.bf16.msra.mxu0 0
  %195 = vmatprep.mubr.bf16.mxu0 0
  %196 = vmatmul.mubr.bf16.gmra.mrb[0].mxu0 %v162
  %v197 = vpop.f32.mrb[0].mxu0
  %v198 = vadd.f32 0.0, %v197
  %v199 = vpop.f32.mrb[0].mxu0
  %v200 = vpop.f32.mrb[0].mxu0
  %v201 = vadd.f32 0.0, %v200
  %v202 = vpop.f32.mrb[0].mxu0
  %203 = vdwg.mxu0
  %v204 = vadd.f32 %v160, %v198
  %v205 = vadd.f32 %v161, %v201
  %v206 = vtanh.pop %v204
  %v207 = vtanh.pop %v205
  %vm208 = vcmp.gt.s32.totalorder %v41, 1
  %vm209 = vcmp.gt.s32.totalorder %v42, 1
  %v210 = vsel %vm208, 1, 0
  %v211 = vsel %vm209, 1, 0
  %212 = vset.pattern.permute.xlu0 0
  %213 = vperm.xlu0 %212, %v210
  %v214 = vpop.permute.xlu0 %213
  %215 = vset.pattern.permute.xlu0 0
  %216 = vperm.xlu0 %215, %v211
  %v217 = vpop.permute.xlu0 %216
  %vm218 = vcmp.eq.s32.totalorder %v214, 1
  %vm219 = vcmp.eq.s32.totalorder %v217, 1
  %v220 = vsel %vm218, %v206, %v155
  %v221 = vsel %vm219, %v207, %v156
  %s222 = scalar_lea.vmem %s0, 16
  %v223 = vld [vmem:[%s222] sm:$0xf]
  %v224 = vld [vmem:[%s222 + $0x4] sm:$0xf]
  %v225 = vunpack.c.l.bf16 %v223
  %v226 = vunpack.c.l.bf16 %v224
  %v227 = vpack.c.bf16 %v221, %v220
  %228 = vmatprep.subr.bf16.mxu0 0
  %229 = vmatpush1.bf16.msra.mxu0 %v82
  %230 = vmatprep.subr.bf16.mxu0 0
  %231 = vmatpush1.bf16.msra.mxu0 %v83
  %232 = vmatprep.subr.bf16.mxu0 0
  %233 = vmatpush1.bf16.msra.mxu0 %v84
  %234 = vmatprep.subr.bf16.mxu0 0
  %235 = vmatpush1.bf16.msra.mxu0 %v85
  %236 = vmatprep.subr.bf16.mxu0 0
  %237 = vmatpush1.bf16.msra.mxu0 %v86
  %238 = vmatprep.subr.bf16.mxu0 0
  %239 = vmatpush1.bf16.msra.mxu0 %v87
  %240 = vmatprep.subr.bf16.mxu0 0
  %241 = vmatpush1.bf16.msra.mxu0 %v88
  %242 = vmatprep.subr.bf16.mxu0 0
  %243 = vmatpush1.bf16.msra.mxu0 %v89
  %244 = vmatprep.subr.bf16.mxu0 0
  %245 = vmatpush1.bf16.msra.mxu0 0
  %246 = vmatprep.subr.bf16.mxu0 0
  %247 = vmatpush1.bf16.msra.mxu0 0
  %248 = vmatprep.subr.bf16.mxu0 0
  %249 = vmatpush1.bf16.msra.mxu0 0
  %250 = vmatprep.subr.bf16.mxu0 0
  %251 = vmatpush1.bf16.msra.mxu0 0
  %252 = vmatprep.subr.bf16.mxu0 0
  %253 = vmatpush1.bf16.msra.mxu0 0
  %254 = vmatprep.subr.bf16.mxu0 0
  %255 = vmatpush1.bf16.msra.mxu0 0
  %256 = vmatprep.subr.bf16.mxu0 0
  %257 = vmatpush1.bf16.msra.mxu0 0
  %258 = vmatprep.subr.bf16.mxu0 0
  %259 = vmatpush1.bf16.msra.mxu0 0
  %260 = vmatprep.mubr.bf16.mxu0 0
  %261 = vmatmul.mubr.bf16.gmra.mrb[0].mxu0 %v227
  %v262 = vpop.f32.mrb[0].mxu0
  %v263 = vadd.f32 0.0, %v262
  %v264 = vpop.f32.mrb[0].mxu0
  %v265 = vpop.f32.mrb[0].mxu0
  %v266 = vadd.f32 0.0, %v265
  %v267 = vpop.f32.mrb[0].mxu0
  %268 = vdwg.mxu0
  %v269 = vadd.f32 %v225, %v263
  %v270 = vadd.f32 %v226, %v266
  %v271 = vtanh.pop %v269
  %v272 = vtanh.pop %v270
  %vm273 = vcmp.gt.s32.totalorder %v41, 2
  %vm274 = vcmp.gt.s32.totalorder %v42, 2
  %v275 = vsel %vm273, 1, 0
  %v276 = vsel %vm274, 1, 0
  %277 = vset.pattern.permute.xlu0 0
  %278 = vperm.xlu0 %277, %v275
  %v279 = vpop.permute.xlu0 %278
  %280 = vset.pattern.permute.xlu0 0
  %281 = vperm.xlu0 %280, %v276
  %v282 = vpop.permute.xlu0 %281
  %vm283 = vcmp.eq.s32.totalorder %v279, 1
  %vm284 = vcmp.eq.s32.totalorder %v282, 1
  %v285 = vsel %vm283, %v271, %v220
  %v286 = vsel %vm284, %v272, %v221
  %s287 = scalar_lea.vmem %s0, 24
  %v288 = vld [vmem:[%s287] sm:$0xf]
  %v289 = vld [vmem:[%s287 + $0x4] sm:$0xf]
  %v290 = vunpack.c.l.bf16 %v288
  %v291 = vunpack.c.l.bf16 %v289
  %v292 = vpack.c.bf16 %v286, %v285
  %293 = vmatprep.subr.bf16.mxu0 0
  %294 = vmatpush1.bf16.msra.mxu0 %v82
  %295 = vmatprep.subr.bf16.mxu0 0
  %296 = vmatpush1.bf16.msra.mxu0 %v83
  %297 = vmatprep.subr.bf16.mxu0 0
  %298 = vmatpush1.bf16.msra.mxu0 %v84
  %299 = vmatprep.subr.bf16.mxu0 0
  %300 = vmatpush1.bf16.msra.mxu0 %v85
  %301 = vmatprep.subr.bf16.mxu0 0
  %302 = vmatpush1.bf16.msra.mxu0 %v86
  %303 = vmatprep.subr.bf16.mxu0 0
  %304 = vmatpush1.bf16.msra.mxu0 %v87
  %305 = vmatprep.subr.bf16.mxu0 0
  %306 = vmatpush1.bf16.msra.mxu0 %v88
  %307 = vmatprep.subr.bf16.mxu0 0
  %308 = vmatpush1.bf16.msra.mxu0 %v89
  %309 = vmatprep.subr.bf16.mxu0 0
  %310 = vmatpush1.bf16.msra.mxu0 0
  %311 = vmatprep.subr.bf16.mxu0 0
  %312 = vmatpush1.bf16.msra.mxu0 0
  %313 = vmatprep.subr.bf16.mxu0 0
  %314 = vmatpush1.bf16.msra.mxu0 0
  %315 = vmatprep.subr.bf16.mxu0 0
  %316 = vmatpush1.bf16.msra.mxu0 0
  %317 = vmatprep.subr.bf16.mxu0 0
  %318 = vmatpush1.bf16.msra.mxu0 0
  %319 = vmatprep.subr.bf16.mxu0 0
  %320 = vmatpush1.bf16.msra.mxu0 0
  %321 = vmatprep.subr.bf16.mxu0 0
  %322 = vmatpush1.bf16.msra.mxu0 0
  %323 = vmatprep.subr.bf16.mxu0 0
  %324 = vmatpush1.bf16.msra.mxu0 0
  %325 = vmatprep.mubr.bf16.mxu0 0
  %326 = vmatmul.mubr.bf16.gmra.mrb[0].mxu0 %v292
  %v327 = vpop.f32.mrb[0].mxu0
  %v328 = vadd.f32 0.0, %v327
  %v329 = vpop.f32.mrb[0].mxu0
  %v330 = vpop.f32.mrb[0].mxu0
  %v331 = vadd.f32 0.0, %v330
  %v332 = vpop.f32.mrb[0].mxu0
  %333 = vdwg.mxu0
  %v334 = vadd.f32 %v290, %v328
  %v335 = vadd.f32 %v291, %v331
  %v336 = vtanh.pop %v334
  %v337 = vtanh.pop %v335
  %vm338 = vcmp.gt.s32.totalorder %v41, 3
  %vm339 = vcmp.gt.s32.totalorder %v42, 3
  %v340 = vsel %vm338, 1, 0
  %v341 = vsel %vm339, 1, 0
  %342 = vset.pattern.permute.xlu0 0
  %343 = vperm.xlu0 %342, %v340
  %v344 = vpop.permute.xlu0 %343
  %345 = vset.pattern.permute.xlu0 0
  %346 = vperm.xlu0 %345, %v341
  %v347 = vpop.permute.xlu0 %346
  %vm348 = vcmp.eq.s32.totalorder %v344, 1
  %vm349 = vcmp.eq.s32.totalorder %v347, 1
  %v350 = vsel %vm348, %v336, %v285
  %v351 = vsel %vm349, %v337, %v286
  %s352 = scalar_lea.vmem %s0, 32
  %v353 = vld [vmem:[%s352] sm:$0xf]
  %v354 = vld [vmem:[%s352 + $0x4] sm:$0xf]
  %v355 = vunpack.c.l.bf16 %v353
  %v356 = vunpack.c.l.bf16 %v354
  %v357 = vpack.c.bf16 %v351, %v350
  %358 = vmatprep.subr.bf16.mxu0 0
  %359 = vmatpush1.bf16.msra.mxu0 %v82
  %360 = vmatprep.subr.bf16.mxu0 0
  %361 = vmatpush1.bf16.msra.mxu0 %v83
  %362 = vmatprep.subr.bf16.mxu0 0
  %363 = vmatpush1.bf16.msra.mxu0 %v84
  %364 = vmatprep.subr.bf16.mxu0 0
  %365 = vmatpush1.bf16.msra.mxu0 %v85
  %366 = vmatprep.subr.bf16.mxu0 0
  %367 = vmatpush1.bf16.msra.mxu0 %v86
  %368 = vmatprep.subr.bf16.mxu0 0
  %369 = vmatpush1.bf16.msra.mxu0 %v87
  %370 = vmatprep.subr.bf16.mxu0 0
  %371 = vmatpush1.bf16.msra.mxu0 %v88
  %372 = vmatprep.subr.bf16.mxu0 0
  %373 = vmatpush1.bf16.msra.mxu0 %v89
  %374 = vmatprep.subr.bf16.mxu0 0
  %375 = vmatpush1.bf16.msra.mxu0 0
  %376 = vmatprep.subr.bf16.mxu0 0
  %377 = vmatpush1.bf16.msra.mxu0 0
  %378 = vmatprep.subr.bf16.mxu0 0
  %379 = vmatpush1.bf16.msra.mxu0 0
  %380 = vmatprep.subr.bf16.mxu0 0
  %381 = vmatpush1.bf16.msra.mxu0 0
  %382 = vmatprep.subr.bf16.mxu0 0
  %383 = vmatpush1.bf16.msra.mxu0 0
  %384 = vmatprep.subr.bf16.mxu0 0
  %385 = vmatpush1.bf16.msra.mxu0 0
  %386 = vmatprep.subr.bf16.mxu0 0
  %387 = vmatpush1.bf16.msra.mxu0 0
  %388 = vmatprep.subr.bf16.mxu0 0
  %389 = vmatpush1.bf16.msra.mxu0 0
  %390 = vmatprep.mubr.bf16.mxu0 0
  %391 = vmatmul.mubr.bf16.gmra.mrb[0].mxu0 %v357
  %v392 = vpop.f32.mrb[0].mxu0
  %v393 = vadd.f32 0.0, %v392
  %v394 = vpop.f32.mrb[0].mxu0
  %v395 = vpop.f32.mrb[0].mxu0
  %v396 = vadd.f32 0.0, %v395
  %v397 = vpop.f32.mrb[0].mxu0
  %398 = vdwg.mxu0
  %v399 = vadd.f32 %v355, %v393
  %v400 = vadd.f32 %v356, %v396
  %v401 = vtanh.pop %v399
  %v402 = vtanh.pop %v400
  %vm403 = vcmp.gt.s32.totalorder %v41, 4
  %vm404 = vcmp.gt.s32.totalorder %v42, 4
  %v405 = vsel %vm403, 1, 0
  %v406 = vsel %vm404, 1, 0
  %407 = vset.pattern.permute.xlu0 0
  %408 = vperm.xlu0 %407, %v405
  %v409 = vpop.permute.xlu0 %408
  %410 = vset.pattern.permute.xlu0 0
  %411 = vperm.xlu0 %410, %v406
  %v412 = vpop.permute.xlu0 %411
  %vm413 = vcmp.eq.s32.totalorder %v409, 1
  %vm414 = vcmp.eq.s32.totalorder %v412, 1
  %v415 = vsel %vm413, %v401, %v350
  %v416 = vsel %vm414, %v402, %v351
  %s417 = scalar_lea.vmem %s0, 40
  %v418 = vld [vmem:[%s417] sm:$0xf]
  %v419 = vld [vmem:[%s417 + $0x4] sm:$0xf]
  %v420 = vunpack.c.l.bf16 %v418
  %v421 = vunpack.c.l.bf16 %v419
  %v422 = vpack.c.bf16 %v416, %v415
  %423 = vmatprep.subr.bf16.mxu0 0
  %424 = vmatpush1.bf16.msra.mxu0 %v82
  %425 = vmatprep.subr.bf16.mxu0 0
  %426 = vmatpush1.bf16.msra.mxu0 %v83
  %427 = vmatprep.subr.bf16.mxu0 0
  %428 = vmatpush1.bf16.msra.mxu0 %v84
  %429 = vmatprep.subr.bf16.mxu0 0
  %430 = vmatpush1.bf16.msra.mxu0 %v85
  %431 = vmatprep.subr.bf16.mxu0 0
  %432 = vmatpush1.bf16.msra.mxu0 %v86
  %433 = vmatprep.subr.bf16.mxu0 0
  %434 = vmatpush1.bf16.msra.mxu0 %v87
  %435 = vmatprep.subr.bf16.mxu0 0
  %436 = vmatpush1.bf16.msra.mxu0 %v88
  %437 = vmatprep.subr.bf16.mxu0 0
  %438 = vmatpush1.bf16.msra.mxu0 %v89
  %439 = vmatprep.subr.bf16.mxu0 0
  %440 = vmatpush1.bf16.msra.mxu0 0
  %441 = vmatprep.subr.bf16.mxu0 0
  %442 = vmatpush1.bf16.msra.mxu0 0
  %443 = vmatprep.subr.bf16.mxu0 0
  %444 = vmatpush1.bf16.msra.mxu0 0
  %445 = vmatprep.subr.bf16.mxu0 0
  %446 = vmatpush1.bf16.msra.mxu0 0
  %447 = vmatprep.subr.bf16.mxu0 0
  %448 = vmatpush1.bf16.msra.mxu0 0
  %449 = vmatprep.subr.bf16.mxu0 0
  %450 = vmatpush1.bf16.msra.mxu0 0
  %451 = vmatprep.subr.bf16.mxu0 0
  %452 = vmatpush1.bf16.msra.mxu0 0
  %453 = vmatprep.subr.bf16.mxu0 0
  %454 = vmatpush1.bf16.msra.mxu0 0
  %455 = vmatprep.mubr.bf16.mxu0 0
  %456 = vmatmul.mubr.bf16.gmra.mrb[0].mxu0 %v422
  %v457 = vpop.f32.mrb[0].mxu0
  %v458 = vadd.f32 0.0, %v457
  %v459 = vpop.f32.mrb[0].mxu0
  %v460 = vpop.f32.mrb[0].mxu0
  %v461 = vadd.f32 0.0, %v460
  %v462 = vpop.f32.mrb[0].mxu0
  %463 = vdwg.mxu0
  %v464 = vadd.f32 %v420, %v458
  %v465 = vadd.f32 %v421, %v461
  %v466 = vtanh.pop %v464
  %v467 = vtanh.pop %v465
  %vm468 = vcmp.gt.s32.totalorder %v41, 5
  %vm469 = vcmp.gt.s32.totalorder %v42, 5
  %v470 = vsel %vm468, 1, 0
  %v471 = vsel %vm469, 1, 0
  %472 = vset.pattern.permute.xlu0 0
  %473 = vperm.xlu0 %472, %v470
  %v474 = vpop.permute.xlu0 %473
  %475 = vset.pattern.permute.xlu0 0
  %476 = vperm.xlu0 %475, %v471
  %v477 = vpop.permute.xlu0 %476
  %vm478 = vcmp.eq.s32.totalorder %v474, 1
  %vm479 = vcmp.eq.s32.totalorder %v477, 1
  %v480 = vsel %vm478, %v466, %v415
  %v481 = vsel %vm479, %v467, %v416
  %s482 = scalar_lea.vmem %s0, 48
  %v483 = vld [vmem:[%s482] sm:$0xf]
  %v484 = vld [vmem:[%s482 + $0x4] sm:$0xf]
  %v485 = vunpack.c.l.bf16 %v483
  %v486 = vunpack.c.l.bf16 %v484
  %v487 = vpack.c.bf16 %v481, %v480
  %488 = vmatprep.subr.bf16.mxu0 0
  %489 = vmatpush1.bf16.msra.mxu0 %v82
  %490 = vmatprep.subr.bf16.mxu0 0
  %491 = vmatpush1.bf16.msra.mxu0 %v83
  %492 = vmatprep.subr.bf16.mxu0 0
  %493 = vmatpush1.bf16.msra.mxu0 %v84
  %494 = vmatprep.subr.bf16.mxu0 0
  %495 = vmatpush1.bf16.msra.mxu0 %v85
  %496 = vmatprep.subr.bf16.mxu0 0
  %497 = vmatpush1.bf16.msra.mxu0 %v86
  %498 = vmatprep.subr.bf16.mxu0 0
  %499 = vmatpush1.bf16.msra.mxu0 %v87
  %500 = vmatprep.subr.bf16.mxu0 0
  %501 = vmatpush1.bf16.msra.mxu0 %v88
  %502 = vmatprep.subr.bf16.mxu0 0
  %503 = vmatpush1.bf16.msra.mxu0 %v89
  %504 = vmatprep.subr.bf16.mxu0 0
  %505 = vmatpush1.bf16.msra.mxu0 0
  %506 = vmatprep.subr.bf16.mxu0 0
  %507 = vmatpush1.bf16.msra.mxu0 0
  %508 = vmatprep.subr.bf16.mxu0 0
  %509 = vmatpush1.bf16.msra.mxu0 0
  %510 = vmatprep.subr.bf16.mxu0 0
  %511 = vmatpush1.bf16.msra.mxu0 0
  %512 = vmatprep.subr.bf16.mxu0 0
  %513 = vmatpush1.bf16.msra.mxu0 0
  %514 = vmatprep.subr.bf16.mxu0 0
  %515 = vmatpush1.bf16.msra.mxu0 0
  %516 = vmatprep.subr.bf16.mxu0 0
  %517 = vmatpush1.bf16.msra.mxu0 0
  %518 = vmatprep.subr.bf16.mxu0 0
  %519 = vmatpush1.bf16.msra.mxu0 0
  %520 = vmatprep.mubr.bf16.mxu0 0
  %521 = vmatmul.mubr.bf16.gmra.mrb[0].mxu0 %v487
  %v522 = vpop.f32.mrb[0].mxu0
  %v523 = vadd.f32 0.0, %v522
  %v524 = vpop.f32.mrb[0].mxu0
  %v525 = vpop.f32.mrb[0].mxu0
  %v526 = vadd.f32 0.0, %v525
  %v527 = vpop.f32.mrb[0].mxu0
  %528 = vdwg.mxu0
  %v529 = vadd.f32 %v485, %v523
  %v530 = vadd.f32 %v486, %v526
  %v531 = vtanh.pop %v529
  %v532 = vtanh.pop %v530
  %vm533 = vcmp.gt.s32.totalorder %v41, 6
  %vm534 = vcmp.gt.s32.totalorder %v42, 6
  %v535 = vsel %vm533, 1, 0
  %v536 = vsel %vm534, 1, 0
  %537 = vset.pattern.permute.xlu0 0
  %538 = vperm.xlu0 %537, %v535
  %v539 = vpop.permute.xlu0 %538
  %540 = vset.pattern.permute.xlu0 0
  %541 = vperm.xlu0 %540, %v536
  %v542 = vpop.permute.xlu0 %541
  %vm543 = vcmp.eq.s32.totalorder %v539, 1
  %vm544 = vcmp.eq.s32.totalorder %v542, 1
  %v545 = vsel %vm543, %v531, %v480
  %v546 = vsel %vm544, %v532, %v481
  %s547 = scalar_lea.vmem %s0, 56
  %v548 = vld [vmem:[%s547] sm:$0xf]
  %v549 = vld [vmem:[%s547 + $0x4] sm:$0xf]
  %v550 = vunpack.c.l.bf16 %v548
  %v551 = vunpack.c.l.bf16 %v549
  %v552 = vpack.c.bf16 %v546, %v545
  %553 = vmatprep.subr.bf16.mxu0 0
  %554 = vmatpush1.bf16.msra.mxu0 %v82
  %555 = vmatprep.subr.bf16.mxu0 0
  %556 = vmatpush1.bf16.msra.mxu0 %v83
  %557 = vmatprep.subr.bf16.mxu0 0
  %558 = vmatpush1.bf16.msra.mxu0 %v84
  %559 = vmatprep.subr.bf16.mxu0 0
  %560 = vmatpush1.bf16.msra.mxu0 %v85
  %561 = vmatprep.subr.bf16.mxu0 0
  %562 = vmatpush1.bf16.msra.mxu0 %v86
  %563 = vmatprep.subr.bf16.mxu0 0
  %564 = vmatpush1.bf16.msra.mxu0 %v87
  %565 = vmatprep.subr.bf16.mxu0 0
  %566 = vmatpush1.bf16.msra.mxu0 %v88
  %567 = vmatprep.subr.bf16.mxu0 0
  %568 = vmatpush1.bf16.msra.mxu0 %v89
  %569 = vmatprep.subr.bf16.mxu0 0
  %570 = vmatpush1.bf16.msra.mxu0 0
  %571 = vmatprep.subr.bf16.mxu0 0
  %572 = vmatpush1.bf16.msra.mxu0 0
  %573 = vmatprep.subr.bf16.mxu0 0
  %574 = vmatpush1.bf16.msra.mxu0 0
  %575 = vmatprep.subr.bf16.mxu0 0
  %576 = vmatpush1.bf16.msra.mxu0 0
  %577 = vmatprep.subr.bf16.mxu0 0
  %578 = vmatpush1.bf16.msra.mxu0 0
  %579 = vmatprep.subr.bf16.mxu0 0
  %580 = vmatpush1.bf16.msra.mxu0 0
  %581 = vmatprep.subr.bf16.mxu0 0
  %582 = vmatpush1.bf16.msra.mxu0 0
  %583 = vmatprep.subr.bf16.mxu0 0
  %584 = vmatpush1.bf16.msra.mxu0 0
  %585 = vmatprep.mubr.bf16.mxu0 0
  %586 = vmatmul.mubr.bf16.gmra.mrb[0].mxu0 %v552
  %v587 = vpop.f32.mrb[0].mxu0
  %v588 = vadd.f32 0.0, %v587
  %v589 = vpop.f32.mrb[0].mxu0
  %v590 = vpop.f32.mrb[0].mxu0
  %v591 = vadd.f32 0.0, %v590
  %v592 = vpop.f32.mrb[0].mxu0
  %593 = vdwg.mxu0
  %v594 = vadd.f32 %v550, %v588
  %v595 = vadd.f32 %v551, %v591
  %v596 = vtanh.pop %v594
  %v597 = vtanh.pop %v595
  %vm598 = vcmp.gt.s32.totalorder %v41, 7
  %vm599 = vcmp.gt.s32.totalorder %v42, 7
  %v600 = vsel %vm598, 1, 0
  %v601 = vsel %vm599, 1, 0
  %602 = vset.pattern.permute.xlu0 0
  %603 = vperm.xlu0 %602, %v600
  %v604 = vpop.permute.xlu0 %603
  %605 = vset.pattern.permute.xlu0 0
  %606 = vperm.xlu0 %605, %v601
  %v607 = vpop.permute.xlu0 %606
  %vm608 = vcmp.eq.s32.totalorder %v604, 1
  %vm609 = vcmp.eq.s32.totalorder %v607, 1
  %v610 = vsel %vm608, %v596, %v545
  %v611 = vsel %vm609, %v597, %v546
  %612 = vst [vmem:[%s3] sm:$0xff] %v610
  %613 = vst [vmem:[%s3 + $0x8] sm:$0xff] %v611
  // Predicated region
  $region18: #{rnn_model.1} parent=0 // pred_check
    _
  $region19: #{rnn_model.1} parent=0 // pred_check_branch
    %615 = sbr.rel (0) target = $region21
  $region20: #{rnn_model.1} parent=0 // pred_region
    _
  $region21: #{rnn_model.1} parent=0 // pred_fallthru
    _
  // Predicated region
  $region22: #{rnn_model.1} parent=0 // pred_check
    _
  $region23: #{rnn_model.1} parent=0 // pred_check_branch
    %617 = sbr.rel (0) target = $region25
  $region24: #{rnn_model.1} parent=0 // pred_region
    _
  $region25: #{rnn_model.1} parent=0 // pred_fallthru
    _

</llo_original>
